<compile_context>
chip_gen: v6e
topology: v6e:2x2x1
jax: 0.10.0
libtpu: 0.0.40
codegen_flags: <defaults>
</compile_context>

<pallas_src>
import math

import jax
import jax.numpy as jnp
from jax import lax
from jax.experimental import pallas as pl
from jax.experimental.pallas import tpu as pltpu

_INV_SQRT2 = 1.0 / math.sqrt(2.0)


# --------------------------------------------------------------------------- #
# Kernel
# --------------------------------------------------------------------------- #
def _make_ffn_kernel(approximate_gelu):
    def ffn_kernel(x_ref, w1_ref, b1_ref, w2_ref, b2_ref, o_ref, acc_ref):
        # x_ref: (tm, H)   w1_ref: (H, tf)   b1_ref: (1, tf)
        # w2_ref: (tf, H)  b2_ref: (1, H)    o_ref: (tm, H)  acc_ref: (tm, H) f32
        k = pl.program_id(1)

        @pl.when(k == 0)
        def _init():
            acc_ref[...] = jnp.zeros_like(acc_ref)

        # First 1x1 conv == matmul on the MXU: native operand dtype, f32 accumulate.
        h = jnp.dot(x_ref[...], w1_ref[...], preferred_element_type=jnp.float32)
        h = h + b1_ref[...].astype(jnp.float32)

        if approximate_gelu:
            # tanh approximation -> EUP slot (deviates slightly from torch exact GELU).
            h = jax.nn.gelu(h, approximate=True)
        else:
            # Exact GELU (erf-based, matches torch.nn.functional.gelu default).
            h = 0.5 * h * (1.0 + lax.erf(h * jnp.float32(_INV_SQRT2)))

        # Second 1x1 conv: this F-chunk's partial contribution, accumulated in f32.
        acc_ref[...] += jnp.dot(h.astype(w2_ref.dtype), w2_ref[...],
                                preferred_element_type=jnp.float32)

        @pl.when(k == pl.num_programs(1) - 1)
        def _finalize():
            o_ref[...] = (acc_ref[...] + b2_ref[...].astype(jnp.float32)
                          ).astype(o_ref.dtype)

    return ffn_kernel


# --------------------------------------------------------------------------- #
# Tiling / VMEM budgeting helpers
# --------------------------------------------------------------------------- #
def _round_up(x, m):
    return ((x + m - 1) // m) * m


def _cdiv(a, b):
    return (a + b - 1) // b


def _device_generation():
    kind = ""
    try:
        kind = jax.devices()[0].device_kind.lower()
    except Exception:
        pass
    if "v5" in kind:
        return "v5"
    if "v6" in kind:
        return "v6"
    if "v7" in kind or "7x" in kind:
        return "v7"
    return "unknown"


def _vmem_capacity_bytes(gen):
    try:
        info = pltpu.get_tpu_info()
        cap = int(getattr(info, "vmem_capacity_bytes", 0) or 0)
        if cap > 0:
            return cap
    except Exception:
        pass
    # v5e / v6e: 128 MiB per TensorCore; v7x: 64 MiB; unknown: be conservative.
    return {"v5": 128 << 20, "v6": 128 << 20, "v7": 64 << 20}.get(gen, 64 << 20)


def _vmem_footprint(tm, tf, H, act_item, w_item, w_bufs):
    """Per-step compiler-managed VMEM bytes for the chosen tiles."""
    f = 0
    f += 2 * tm * H * act_item          # x tile (double-buffered)
    f += 2 * tm * H * act_item          # out tile (double-buffered)
    f += w_bufs * H * tf * w_item       # W1 F-chunk
    f += w_bufs * tf * H * w_item       # W2 F-chunk
    f += 2 * (tf + H) * w_item          # b1 chunk + b2
    f += 4 * tm * H                     # f32 accumulator scratch
    f += (4 + w_item) * tm * tf         # materialized f32 intermediate + cast copy
    f += 2 << 20                        # compiler temporaries / headroom
    return f


def _select_tiles(M, H, F, act_item, w_item, gen, tm_req, tf_req, w_bufs, budget):
    # (tm, tf, F-chunk alignment) defaults per generation.
    defaults = {
        "v5": (512, 2048, 128),   # compute-bound at tm=512; big VMEM
        "v6": (1024, 1024, 128),  # larger token tile -> weight traffic halved
        "v7": (512, 1024, 256),   # 64 MiB VMEM; tf multiple of 256 for 2x256^2 MXU
        "unknown": (512, 1024, 128),
    }
    tm_d, tf_d, align = defaults[gen]
    tm = _round_up(int(tm_req), 8) if tm_req else tm_d
    tf = _round_up(int(tf_req), align) if tf_req else tf_d

    tm = min(tm, _round_up(M, 8))
    tf = min(tf, _round_up(F, align))

    # v7x has 2 TensorCores: make sure the "parallel" token axis has >= 2 tiles.
    if gen == "v7" and M > 8 and _cdiv(M, tm) < 2:
        tm = min(tm, _round_up(_cdiv(M, 2), 8))

    def fp(a, b):
        return _vmem_footprint(a, b, H, act_item, w_item, w_bufs)

    # Shrink to the VMEM budget: F-chunk first (cheap once compute-bound),
    # then the token tile; keep 8-sublane / `align`-lane granularity.
    while fp(tm, tf) > budget and tf > max(align, 256):
        tf = max(align, (tf // 2 // align) * align)
    while fp(tm, tf) > budget and tm > 128:
        tm = max(8, _round_up(tm // 2, 8))
    while fp(tm, tf) > budget and tf > align:
        tf = max(align, (tf // 2 // align) * align)
    while fp(tm, tf) > budget and tm > 8:
        tm = max(8, _round_up(tm // 2, 8))
    return tm, tf, align


def _resolve_f_tiling(F, tf, align):
    """Return (tf_eff, F_pad): prefer an aligned divisor of F near the target;
    otherwise zero-pad F up to a multiple of tf (exact, see kernel notes)."""
    if tf >= F:
        return F, F
    lo = max(align, (tf // 2 // align) * align)
    t = (tf // align) * align
    while t >= lo:
        if F % t == 0:
            return t, F
        t -= align
    return tf, _round_up(F, tf)


# --------------------------------------------------------------------------- #
# Wrapper
# --------------------------------------------------------------------------- #
def feed_forward_network(x, w1, b1, w2, b2, *, tm=None, tf=None,
                         weight_buffer_count=2, vmem_limit_bytes=None,
                         approximate_gelu=False):
    """x: (B, S, H); w1: (H, F); b1: (1, F); w2: (F, H); b2: (1, H)."""
    B, S, H = x.shape
    F = w1.shape[1]
    M = B * S

    act_item = jnp.dtype(x.dtype).itemsize
    w_item = jnp.dtype(w1.dtype).itemsize

    gen = _device_generation()
    cap = _vmem_capacity_bytes(gen)
    budget = int(vmem_limit_bytes) if vmem_limit_bytes else int(cap * 0.82)

    w_bufs = max(2, int(weight_buffer_count))
    tm_eff, tf_target, align = _select_tiles(M, H, F, act_item, w_item, gen,
                                             tm, tf, w_bufs, budget)
    tf_eff, F_pad = _resolve_f_tiling(F, tf_target, align)

    if F_pad != F:
        # Zero-pad only the FFN dimension of the weights (exact: gelu(0) == 0
        # and the padded W2 rows are zero). Activations are never padded.
        w1 = jnp.pad(w1, ((0, 0), (0, F_pad - F)))
        b1 = jnp.pad(b1, ((0, 0), (0, F_pad - F)))
        w2 = jnp.pad(w2, ((0, F_pad - F), (0, 0)))

    x2 = x.reshape(M, H)
    grid = (_cdiv(M, tm_eff), F_pad // tf_eff)

    def _wspec(shape, index_map):
        # Optional deeper buffering for the per-step-varying weight chunks.
        if w_bufs > 2:
            try:
                return pl.BlockSpec(shape, index_map,
                                    pipeline_mode=pl.Buffered(w_bufs))
            except TypeError:
                pass
        return pl.BlockSpec(shape, index_map)

    footprint = _vmem_footprint(tm_eff, tf_eff, H, act_item, w_item, w_bufs)
    vmem_limit = int(min(cap, max(budget, footprint)))

    cost = pl.CostEstimate(
        flops=4 * M * H * F_pad,                 # two (M,H,F) matmuls
        transcendentals=M * F_pad,               # erf per intermediate element
        bytes_accessed=int(2 * M * H * act_item
                           + grid[0] * (2 * H * F_pad + F_pad + H) * w_item),
    )

    out2 = pl.pallas_call(
        _make_ffn_kernel(approximate_gelu),
        out_shape=jax.ShapeDtypeStruct((M, H), x.dtype),
        grid_spec=pltpu.PrefetchScalarGridSpec(
            num_scalar_prefetch=0,
            grid=grid,
            in_specs=[
                pl.BlockSpec((tm_eff, H), lambda i, k: (i, 0)),   # token tile
                _wspec((H, tf_eff), lambda i, k: (0, k)),         # W1 F-chunk
                pl.BlockSpec((1, tf_eff), lambda i, k: (0, k)),   # b1 F-chunk
                _wspec((tf_eff, H), lambda i, k: (k, 0)),         # W2 F-chunk
                pl.BlockSpec((1, H), lambda i, k: (0, 0)),        # b2
            ],
            out_specs=pl.BlockSpec((tm_eff, H), lambda i, k: (i, 0)),
            scratch_shapes=[pltpu.VMEM((tm_eff, H), jnp.float32)],
        ),
        compiler_params=pltpu.CompilerParams(
            dimension_semantics=("parallel", "arbitrary"),
            vmem_limit_bytes=vmem_limit,
        ),
        cost_estimate=cost,
    )(x2, w1, b1, w2, b2)

    return out2.reshape(B, S, H)


# --------------------------------------------------------------------------- #
# Reference / init / self-test
# --------------------------------------------------------------------------- #
def init_params(key, dim_hidden, dim_ffn, dtype=jnp.float32):
    """Deterministic init mimicking PyTorch Conv1d defaults (uniform +-1/sqrt(fan_in))."""
    k1, k2, k3, k4 = jax.random.split(key, 4)
    bound1 = 1.0 / math.sqrt(dim_hidden)   # conv1: fan_in = dim_hidden * k(=1)
    bound2 = 1.0 / math.sqrt(dim_ffn)      # conv2: fan_in = dim_ffn * k(=1)
    # stored transposed relative to PyTorch's (out, in, 1): here (in, out)
    w1 = jax.random.uniform(k1, (dim_hidden, dim_ffn), dtype, -bound1, bound1)
    b1 = jax.random.uniform(k2, (1, dim_ffn), dtype, -bound1, bound1)
    w2 = jax.random.uniform(k3, (dim_ffn, dim_hidden), dtype, -bound2, bound2)
    b2 = jax.random.uniform(k4, (1, dim_hidden), dtype, -bound2, bound2)
    return w1, b1, w2, b2


def ffn_reference(x, w1, b1, w2, b2):
    h = x.astype(jnp.float32) @ w1.astype(jnp.float32) + b1[0].astype(jnp.float32)
    h = 0.5 * h * (1.0 + lax.erf(h / jnp.sqrt(2.0)))
    return (h @ w2.astype(jnp.float32) + b2[0].astype(jnp.float32)).astype(x.dtype)


if __name__ == "__main__":
    key = jax.random.PRNGKey(0)
    kx, kp, kx2 = jax.random.split(key, 3)

    # Test 1: nominal small shapes (everything divides cleanly).
    B, S, H, F = 2, 8, 32, 64
    x = jax.random.normal(kx, (B, S, H), dtype=jnp.float32)
    w1, b1, w2, b2 = init_params(kp, H, F)
    out = jax.block_until_ready(feed_forward_network(x, w1, b1, w2, b2))
    ref = ffn_reference(x, w1, b1, w2, b2)
    assert out.shape == (B, S, H)
    assert jnp.allclose(out, ref, atol=2e-5, rtol=2e-5)

    # Test 2: ragged token count (B*S = 14 with a forced tm=8 tile) exercising
    # the no-host-pad path (out-of-bounds rows masked by the pipeline).
    x_r = jax.random.normal(kx2, (2, 7, H), dtype=jnp.float32)
    out_r = jax.block_until_ready(feed_forward_network(x_r, w1, b1, w2, b2, tm=8))
    ref_r = ffn_reference(x_r, w1, b1, w2, b2)
    assert out_r.shape == (2, 7, H)
    assert jnp.allclose(out_r, ref_r, atol=2e-5, rtol=2e-5)

    # Test 3: bf16 operands (production dtype path; f32 accumulation in kernel).
    xb = x.astype(jnp.bfloat16)
    pb = tuple(p.astype(jnp.bfloat16) for p in (w1, b1, w2, b2))
    out_b = jax.block_until_ready(feed_forward_network(xb, *pb))
    ref_b = ffn_reference(xb, *pb)
    assert jnp.allclose(out_b.astype(jnp.float32), ref_b.astype(jnp.float32),
                        atol=5e-2, rtol=5e-2)

    print("KERNEL_OK")
</pallas_src>

<mosaic_0001>
module attributes {stable_mosaic.version = 11 : i64} {
  func.func @ffn_kernel(%arg0: i32, %arg1: i32, %arg2: memref<16x32xf32, #tpu.memory_space<vmem>>, %arg3: memref<32x64xf32, #tpu.memory_space<vmem>>, %arg4: memref<1x64xf32, #tpu.memory_space<vmem>>, %arg5: memref<64x32xf32, #tpu.memory_space<vmem>>, %arg6: memref<1x32xf32, #tpu.memory_space<vmem>>, %arg7: memref<16x32xf32, #tpu.memory_space<vmem>>, %arg8: memref<16x32xf32, #tpu.memory_space<vmem>>) attributes {dimension_semantics = [#tpu.dimension_semantics<parallel>, #tpu.dimension_semantics<arbitrary>], iteration_bounds = array<i64: 1, 1>, scalar_prefetch = 0 : i64, scratch_operands = 1 : i64, tpu.core_type = #tpu.core_type<tc>, window_params = [{transform_indices = @transform_0, window_bounds = array<i64: 16, 32>}, {transform_indices = @transform_1, window_bounds = array<i64: 32, 64>}, {transform_indices = @transform_2, window_bounds = array<i64: 1, 64>}, {transform_indices = @transform_3, window_bounds = array<i64: 64, 32>}, {pipeline_mode = #tpu.pipeline_mode<synchronous>, transform_indices = @transform_4, window_bounds = array<i64: 1, 32>}, {transform_indices = @transform_5, window_bounds = array<i64: 16, 32>}]} {
    %c0_i32 = arith.constant 0 : i32
    %0 = arith.cmpi eq, %arg1, %c0_i32 : i32
    %1 = arith.extui %0 : i1 to i32
    %c0_i32_0 = arith.constant 0 : i32
    %2 = arith.cmpi ne, %1, %c0_i32_0 : i32
    scf.if %2 {
      %cst_18 = arith.constant 0.000000e+00 : f32
      %25 = vector.broadcast %cst_18 : f32 to vector<16x32xf32>
      %c0_19 = arith.constant 0 : index
      %c0_20 = arith.constant 0 : index
      %26 = vector.load %arg8[%c0_19, %c0_20] : memref<16x32xf32, #tpu.memory_space<vmem>>, vector<16x32xf32>
      tpu.vector_store %arg8[%c0_19, %c0_20], %25 {strides = array<i32>} : memref<16x32xf32, #tpu.memory_space<vmem>>, vector<16x32xf32>,
    } else {
    }
    %c0 = arith.constant 0 : index
    %c0_1 = arith.constant 0 : index
    %3 = vector.load %arg2[%c0, %c0_1] : memref<16x32xf32, #tpu.memory_space<vmem>>, vector<16x32xf32>
    %c0_2 = arith.constant 0 : index
    %c0_3 = arith.constant 0 : index
    %4 = vector.load %arg3[%c0_2, %c0_3] : memref<32x64xf32, #tpu.memory_space<vmem>>, vector<32x64xf32>
    %cst = arith.constant dense<0.000000e+00> : vector<16x64xf32>
    %5 = tpu.matmul %3, %4, %cst {dimension_numbers = #tpu.dot_dimension_numbers<[1], [0], [0], [1], [0, 0, 1, 1], [], []>} : vector<16x32xf32>, vector<32x64xf32>, vector<16x64xf32> -> vector<16x64xf32>
    %c0_4 = arith.constant 0 : index
    %c0_5 = arith.constant 0 : index
    %6 = vector.load %arg4[%c0_4, %c0_5] : memref<1x64xf32, #tpu.memory_space<vmem>>, vector<1x64xf32>
    %7 = vector.broadcast %6 : vector<1x64xf32> to vector<16x64xf32>
    %8 = arith.addf %5, %7 : vector<16x64xf32>
    %cst_6 = arith.constant 5.000000e-01 : f32
    %9 = vector.broadcast %cst_6 : f32 to vector<16x64xf32>
    %10 = arith.mulf %9, %8 : vector<16x64xf32>
    %cst_7 = arith.constant 0.707106769 : f32
    %11 = vector.broadcast %cst_7 : f32 to vector<16x64xf32>
    %12 = arith.mulf %8, %11 : vector<16x64xf32>
    %13 = math.erf %12 : vector<16x64xf32>
    %cst_8 = arith.constant 1.000000e+00 : f32
    %14 = vector.broadcast %cst_8 : f32 to vector<16x64xf32>
    %15 = arith.addf %14, %13 : vector<16x64xf32>
    %16 = arith.mulf %10, %15 : vector<16x64xf32>
    %c0_9 = arith.constant 0 : index
    %c0_10 = arith.constant 0 : index
    %17 = vector.load %arg8[%c0_9, %c0_10] : memref<16x32xf32, #tpu.memory_space<vmem>>, vector<16x32xf32>
    %c0_11 = arith.constant 0 : index
    %c0_12 = arith.constant 0 : index
    %18 = vector.load %arg5[%c0_11, %c0_12] : memref<64x32xf32, #tpu.memory_space<vmem>>, vector<64x32xf32>
    %cst_13 = arith.constant dense<0.000000e+00> : vector<16x32xf32>
    %19 = tpu.matmul %16, %18, %cst_13 {dimension_numbers = #tpu.dot_dimension_numbers<[1], [0], [0], [1], [0, 0, 1, 1], [], []>} : vector<16x64xf32>, vector<64x32xf32>, vector<16x32xf32> -> vector<16x32xf32>
    %20 = arith.addf %17, %19 : vector<16x32xf32>
    %c0_14 = arith.constant 0 : index
    %c0_15 = arith.constant 0 : index
    %21 = vector.load %arg8[%c0_14, %c0_15] : memref<16x32xf32, #tpu.memory_space<vmem>>, vector<16x32xf32>
    tpu.vector_store %arg8[%c0_14, %c0_15], %20 {strides = array<i32>} : memref<16x32xf32, #tpu.memory_space<vmem>>, vector<16x32xf32>,
    %c0_i32_16 = arith.constant 0 : i32
    %22 = arith.cmpi eq, %arg1, %c0_i32_16 : i32
    %23 = arith.extui %22 : i1 to i32
    %c0_i32_17 = arith.constant 0 : i32
    %24 = arith.cmpi ne, %23, %c0_i32_17 : i32
    scf.if %24 {
      %c0_18 = arith.constant 0 : index
      %c0_19 = arith.constant 0 : index
      %25 = vector.load %arg8[%c0_18, %c0_19] : memref<16x32xf32, #tpu.memory_space<vmem>>, vector<16x32xf32>
      %c0_20 = arith.constant 0 : index
      %c0_21 = arith.constant 0 : index
      %26 = vector.load %arg6[%c0_20, %c0_21] : memref<1x32xf32, #tpu.memory_space<vmem>>, vector<1x32xf32>
      %27 = vector.broadcast %26 : vector<1x32xf32> to vector<16x32xf32>
      %28 = arith.addf %25, %27 : vector<16x32xf32>
      %c0_22 = arith.constant 0 : index
      %c0_23 = arith.constant 0 : index
      %29 = vector.load %arg7[%c0_22, %c0_23] : memref<16x32xf32, #tpu.memory_space<vmem>>, vector<16x32xf32>
      tpu.vector_store %arg7[%c0_22, %c0_23], %28 {strides = array<i32>} : memref<16x32xf32, #tpu.memory_space<vmem>>, vector<16x32xf32>,
    } else {
    }
    return
  }
  func.func @transform_0(%arg0: i32, %arg1: i32) -> (i32, i32) {
    %c0_i32 = arith.constant 0 : i32
    %c0_i32_0 = arith.constant 0 : i32
    return %arg0, %c0_i32 : i32, i32
  }
  func.func @transform_1(%arg0: i32, %arg1: i32) -> (i32, i32) {
    %c0_i32 = arith.constant 0 : i32
    %c0_i32_0 = arith.constant 0 : i32
    return %c0_i32, %arg1 : i32, i32
  }
  func.func @transform_2(%arg0: i32, %arg1: i32) -> (i32, i32) {
    %c0_i32 = arith.constant 0 : i32
    %c0_i32_0 = arith.constant 0 : i32
    return %c0_i32, %arg1 : i32, i32
  }
  func.func @transform_3(%arg0: i32, %arg1: i32) -> (i32, i32) {
    %c0_i32 = arith.constant 0 : i32
    %c0_i32_0 = arith.constant 0 : i32
    return %arg1, %c0_i32 : i32, i32
  }
  func.func @transform_4(%arg0: i32, %arg1: i32) -> (i32, i32) {
    %c0_i32 = arith.constant 0 : i32
    %c0_i32_0 = arith.constant 0 : i32
    %c0_i32_1 = arith.constant 0 : i32
    return %c0_i32, %c0_i32_0 : i32, i32
  }
  func.func @transform_5(%arg0: i32, %arg1: i32) -> (i32, i32) {
    %c0_i32 = arith.constant 0 : i32
    %c0_i32_0 = arith.constant 0 : i32
    return %arg0, %c0_i32 : i32, i32
  }
}

</mosaic_0001>

<llo_original>
// kernel: tpu_custom_call.1
$region0: #{tpu_custom_call.1}
  #allocation0 [shape = 'u32[]', space=smem, size = 0x4, offset = 0x4, fixed_abs, tag = 'smem constant byte address 0x4 - core index']
  #allocation1 [shape = 'u32[144,128]{1,0:T(1,128)}', space=vmem, size = 0x12000, scoped, tag = 'internal scratch']
  #allocation2 [shape = 'f32[16,32]{1,0:T(8,128)}', space=vmem, size = 0x2000, scoped, tag = 'scratch operand']
  %s0 = inlined_call_operand.vmem [shape: f32[16,32], index: 0, kind: input, shape index: {}]
  %s1 = inlined_call_operand.vmem [shape: f32[32,64], index: 1, kind: input, shape index: {}]
  %s2 = inlined_call_operand.vmem [shape: f32[1,64], index: 2, kind: input, shape index: {}]
  %s3 = inlined_call_operand.vmem [shape: f32[64,32], index: 3, kind: input, shape index: {}]
  %s4 = inlined_call_operand.vmem [shape: f32[1,32], index: 4, kind: input, shape index: {}]
  %s5 = inlined_call_operand.hbm [shape: f32[16,32], index: 5, kind: output, shape index: {}]
  %s6 = sld [smem:[#allocation0]]
  $region38: #{tpu_custom_call.1} parent=0
    _
  %s8 = ssub.s32 1, %s6
  %s9 = scalar_select 0, %s8, %s6
  $region1: #{tpu_custom_call.1} parent=0
    #allocation3 [shape = 'u8[8192]{0}', space=vmem, size = 0x2000, scoped, tag = 'output window, operand 0, single buffered']
    #allocation4 [shape = 's32[1]{0}', space=sflag, size = 0x4, scoped, tag = 'scoped memory for tpu_custom_call.1']
    %10 = vsyncpa [#allocation4], 0
    // Predicated region
    $region2: #{tpu_custom_call.1} parent=1 // pred_check
      _
    $region3: #{tpu_custom_call.1} parent=1 // pred_check_branch
      %12 = sbr.rel (0) target = $region5
    $region4: #{tpu_custom_call.1} parent=1 // pred_region
      _
    $region5: #{tpu_custom_call.1} parent=1 // pred_fallthru
      _
    // Predicated region
    $region6: #{tpu_custom_call.1} parent=1 // pred_check
      _
    $region7: #{tpu_custom_call.1} parent=1 // pred_check_branch
      %14 = sbr.rel (0) target = $region9
    $region8: #{tpu_custom_call.1} parent=1 // pred_region
      _
    $region9: #{tpu_custom_call.1} parent=1 // pred_fallthru
      _
    // Predicated region
    $region10: #{tpu_custom_call.1} parent=1 // pred_check
      _
    $region11: #{tpu_custom_call.1} parent=1 // pred_check_branch
      %16 = sbr.rel (0) target = $region13
    $region12: #{tpu_custom_call.1} parent=1 // pred_region
      _
    $region13: #{tpu_custom_call.1} parent=1 // pred_fallthru
      _
    // Predicated region
    $region14: #{tpu_custom_call.1} parent=1 // pred_check
      _
    $region15: #{tpu_custom_call.1} parent=1 // pred_check_branch
      %18 = sbr.rel (0) target = $region17
    $region16: #{tpu_custom_call.1} parent=1 // pred_region
      _
    $region17: #{tpu_custom_call.1} parent=1 // pred_fallthru
      _
    // Predicated region
    $region18: #{tpu_custom_call.1} parent=1 // pred_check
      _
    $region19: #{tpu_custom_call.1} parent=1 // pred_check_branch
      %20 = sbr.rel (0) target = $region21
    $region20: #{tpu_custom_call.1} parent=1 // pred_region
      _
    $region21: #{tpu_custom_call.1} parent=1 // pred_fallthru
      _
    %p21 = scmp.eq.s32.totalorder 0, 0
    // Predicated region
    $region22: #{tpu_custom_call.1} parent=1 // pred_check
      %p22 = pneg %p21
    $region23: #{tpu_custom_call.1} parent=1 // pred_check_branch
      %24 = sbr.rel (%p22) target = $region25
    $region24: #{tpu_custom_call.1} parent=1 // pred_region
      %vm25 = vcmask 261120
      %26 = vst.msk [vmem:[#allocation2] sm:$0xff] %vm25, 0.0
      %27 = vst.msk [vmem:[#allocation2 + $0x8] sm:$0xff] %vm25, 0.0
    $region25: #{tpu_custom_call.1} parent=1 // pred_fallthru
      _
    %v28 = vld [vmem:[%s0] sm:$0xff]
    %v29 = vld [vmem:[%s0 + $0x8] sm:$0xff]
    %v30 = vld [vmem:[%s1] sm:$0xff]
    %v31 = vld [vmem:[%s1 + $0x8] sm:$0xff]
    %v32 = vld [vmem:[%s1 + $0x10] sm:$0xff]
    %v33 = vld [vmem:[%s1 + $0x18] sm:$0xff]
    %v34 = vld [vmem:[%s2] sm:$0x1]
    %v36 = vlaneseq
    %v37 = vshrl.u32 %v36, 7
    %v38 = vsub.s32 0, %v37
    %v39 = vrot.slane %v34, %v38
    %vm41 = vcmask 261120
    %v43 = vsel %vm41, %v28, 0
    %v46 = vsel %vm41, %v29, 0
    %48 = vmatprep.subr.mxu0 0.0
    %49 = vmatpush1.msra.mxu0 0.0
    %50 = vmatprep.subr.mxu0 0.0
    %51 = vmatpush1.msra.mxu0 0.0
    %52 = vmatprep.subr.mxu0 0.0
    %53 = vmatpush1.msra.mxu0 0.0
    %54 = vmatprep.subr.mxu0 0.0
    %55 = vmatpush1.msra.mxu0 0.0
    %56 = vmatprep.subr.mxu0 0.0
    %57 = vmatpush1.msra.mxu0 0.0
    %58 = vmatprep.subr.mxu0 0.0
    %59 = vmatpush1.msra.mxu0 0.0
    %60 = vmatprep.subr.mxu0 0.0
    %61 = vmatpush1.msra.mxu0 0.0
    %62 = vmatprep.subr.mxu0 0.0
    %63 = vmatpush1.msra.mxu0 0.0
    %64 = vmatprep.subr.mxu0 0.0
    %65 = vmatpush1.msra.mxu0 0.0
    %66 = vmatprep.subr.mxu0 0.0
    %67 = vmatpush1.msra.mxu0 0.0
    %68 = vmatprep.subr.mxu0 0.0
    %69 = vmatpush1.msra.mxu0 0.0
    %70 = vmatprep.subr.mxu0 0.0
    %71 = vmatpush1.msra.mxu0 0.0
    %72 = vmatprep.subr.mxu0 0.0
    %73 = vmatpush1.msra.mxu0 %v33
    %74 = vmatprep.subr.mxu0 0.0
    %75 = vmatpush1.msra.mxu0 %v32
    %76 = vmatprep.subr.mxu0 0.0
    %77 = vmatpush1.msra.mxu0 %v31
    %78 = vmatprep.subr.mxu0 0.0
    %79 = vmatpush1.msra.mxu0 %v30
    %80 = vmatprep.subr.mxu0 0.0
    %81 = vmatpush2.msra.mxu0 0.0
    %82 = vmatprep.subr.mxu0 0.0
    %83 = vmatpush2.msra.mxu0 0.0
    %84 = vmatprep.subr.mxu0 0.0
    %85 = vmatpush2.msra.mxu0 0.0
    %86 = vmatprep.subr.mxu0 0.0
    %87 = vmatpush2.msra.mxu0 0.0
    %88 = vmatprep.subr.mxu0 0.0
    %89 = vmatpush2.msra.mxu0 0.0
    %90 = vmatprep.subr.mxu0 0.0
    %91 = vmatpush2.msra.mxu0 0.0
    %92 = vmatprep.subr.mxu0 0.0
    %93 = vmatpush2.msra.mxu0 0.0
    %94 = vmatprep.subr.mxu0 0.0
    %95 = vmatpush2.msra.mxu0 0.0
    %96 = vmatprep.subr.mxu0 0.0
    %97 = vmatpush2.msra.mxu0 0.0
    %98 = vmatprep.subr.mxu0 0.0
    %99 = vmatpush2.msra.mxu0 0.0
    %100 = vmatprep.subr.mxu0 0.0
    %101 = vmatpush2.msra.mxu0 0.0
    %102 = vmatprep.subr.mxu0 0.0
    %103 = vmatpush2.msra.mxu0 0.0
    %104 = vmatprep.subr.mxu0 0.0
    %105 = vmatpush2.msra.mxu0 0.0
    %106 = vmatprep.subr.mxu0 0.0
    %107 = vmatpush2.msra.mxu0 0.0
    %108 = vmatprep.subr.mxu0 0.0
    %109 = vmatpush2.msra.mxu0 0.0
    %110 = vmatprep.subr.mxu0 0.0
    %111 = vmatpush2.msra.mxu0 0.0
    %112 = vmatprep.mubr.f32.mxu0 0.0
    %113 = vmatmul.mubr.f32.gmra.mxu0 %v43
    %v114 = vpop.f32.mrf.mxu0
    %v115 = vadd.f32 %v39, %v114
    %v116 = vpop.f32.mrf.mxu0
    %117 = vmatprep.mubr.f32.mxu0 0.0
    %118 = vmatmul.mubr.f32.gmra.mxu0 %v46
    %v119 = vpop.f32.mrf.mxu0
    %v120 = vadd.f32 %v39, %v119
    %v121 = vpop.f32.mrf.mxu0
    %122 = vdwg.mxu0
    %v123 = vmul.f32 %v115, 0.5
    %v124 = vmul.f32 %v120, 0.5
    %v125 = vmul.f32 %v115, 0.70710677
    %v126 = vmul.f32 %v120, 0.70710677
    %v127 = verf.f32.pop %v125
    %v128 = verf.f32.pop %v126
    %v129 = vadd.f32 %v127, 1.0
    %v130 = vadd.f32 %v128, 1.0
    %v131 = vmul.f32 %v123, %v129
    %v132 = vmul.f32 %v124, %v130
    %v133 = vld [vmem:[#allocation2] sm:$0xff]
    %v134 = vld [vmem:[#allocation2 + $0x8] sm:$0xff]
    %v135 = vld [vmem:[%s3] sm:$0xff]
    %v136 = vld [vmem:[%s3 + $0x8] sm:$0xff]
    %v137 = vld [vmem:[%s3 + $0x10] sm:$0xff]
    %v138 = vld [vmem:[%s3 + $0x18] sm:$0xff]
    %v139 = vld [vmem:[%s3 + $0x20] sm:$0xff]
    %v140 = vld [vmem:[%s3 + $0x28] sm:$0xff]
    %v141 = vld [vmem:[%s3 + $0x30] sm:$0xff]
    %v142 = vld [vmem:[%s3 + $0x38] sm:$0xff]
    %vm143 = vcmask 523264
    %v145 = vsel %vm143, %v131, 0
    %v148 = vsel %vm143, %v132, 0
    %150 = vmatprep.subr.mxu0 0.0
    %151 = vmatpush1.msra.mxu0 0.0
    %152 = vmatprep.subr.mxu0 0.0
    %153 = vmatpush1.msra.mxu0 0.0
    %154 = vmatprep.subr.mxu0 0.0
    %155 = vmatpush1.msra.mxu0 0.0
    %156 = vmatprep.subr.mxu0 0.0
    %157 = vmatpush1.msra.mxu0 0.0
    %158 = vmatprep.subr.mxu0 0.0
    %159 = vmatpush1.msra.mxu0 0.0
    %160 = vmatprep.subr.mxu0 0.0
    %161 = vmatpush1.msra.mxu0 0.0
    %162 = vmatprep.subr.mxu0 0.0
    %163 = vmatpush1.msra.mxu0 0.0
    %164 = vmatprep.subr.mxu0 0.0
    %165 = vmatpush1.msra.mxu0 0.0
    %166 = vmatprep.subr.mxu0 0.0
    %167 = vmatpush1.msra.mxu0 %v142
    %168 = vmatprep.subr.mxu0 0.0
    %169 = vmatpush1.msra.mxu0 %v141
    %170 = vmatprep.subr.mxu0 0.0
    %171 = vmatpush1.msra.mxu0 %v140
    %172 = vmatprep.subr.mxu0 0.0
    %173 = vmatpush1.msra.mxu0 %v139
    %174 = vmatprep.subr.mxu0 0.0
    %175 = vmatpush1.msra.mxu0 %v138
    %176 = vmatprep.subr.mxu0 0.0
    %177 = vmatpush1.msra.mxu0 %v137
    %178 = vmatprep.subr.mxu0 0.0
    %179 = vmatpush1.msra.mxu0 %v136
    %180 = vmatprep.subr.mxu0 0.0
    %181 = vmatpush1.msra.mxu0 %v135
    %182 = vmatprep.subr.mxu0 0.0
    %183 = vmatpush2.msra.mxu0 0.0
    %184 = vmatprep.subr.mxu0 0.0
    %185 = vmatpush2.msra.mxu0 0.0
    %186 = vmatprep.subr.mxu0 0.0
    %187 = vmatpush2.msra.mxu0 0.0
    %188 = vmatprep.subr.mxu0 0.0
    %189 = vmatpush2.msra.mxu0 0.0
    %190 = vmatprep.subr.mxu0 0.0
    %191 = vmatpush2.msra.mxu0 0.0
    %192 = vmatprep.subr.mxu0 0.0
    %193 = vmatpush2.msra.mxu0 0.0
    %194 = vmatprep.subr.mxu0 0.0
    %195 = vmatpush2.msra.mxu0 0.0
    %196 = vmatprep.subr.mxu0 0.0
    %197 = vmatpush2.msra.mxu0 0.0
    %198 = vmatprep.subr.mxu0 0.0
    %199 = vmatpush2.msra.mxu0 0.0
    %200 = vmatprep.subr.mxu0 0.0
    %201 = vmatpush2.msra.mxu0 0.0
    %202 = vmatprep.subr.mxu0 0.0
    %203 = vmatpush2.msra.mxu0 0.0
    %204 = vmatprep.subr.mxu0 0.0
    %205 = vmatpush2.msra.mxu0 0.0
    %206 = vmatprep.subr.mxu0 0.0
    %207 = vmatpush2.msra.mxu0 0.0
    %208 = vmatprep.subr.mxu0 0.0
    %209 = vmatpush2.msra.mxu0 0.0
    %210 = vmatprep.subr.mxu0 0.0
    %211 = vmatpush2.msra.mxu0 0.0
    %212 = vmatprep.subr.mxu0 0.0
    %213 = vmatpush2.msra.mxu0 0.0
    %214 = vmatprep.mubr.f32.mxu0 0.0
    %215 = vmatmul.mubr.f32.gmra.mxu0 %v145
    %v216 = vpop.f32.mrf.mxu0
    %v217 = vadd.f32 0.0, %v216
    %v218 = vpop.f32.mrf.mxu0
    %219 = vmatprep.mubr.f32.mxu0 0.0
    %220 = vmatmul.mubr.f32.gmra.mxu0 %v148
    %v221 = vpop.f32.mrf.mxu0
    %v222 = vadd.f32 0.0, %v221
    %v223 = vpop.f32.mrf.mxu0
    %224 = vdwg.mxu0
    %v225 = vadd.f32 %v133, %v217
    %v226 = vadd.f32 %v134, %v222
    %227 = vst.msk [vmem:[#allocation2] sm:$0xff] %vm41, %v225
    %228 = vst.msk [vmem:[#allocation2 + $0x8] sm:$0xff] %vm41, %v226
    // Predicated region
    $region26: #{tpu_custom_call.1} parent=1 // pred_check
      %p229 = pneg %p21
    $region27: #{tpu_custom_call.1} parent=1 // pred_check_branch
      %231 = sbr.rel (%p229) target = $region29
    $region28: #{tpu_custom_call.1} parent=1 // pred_region
      %v232 = vld [vmem:[#allocation2] sm:$0xff]
      %v233 = vld [vmem:[#allocation2 + $0x8] sm:$0xff]
      %v234 = vld [vmem:[%s4] sm:$0x1]
      %v236 = vlaneseq
      %v237 = vshrl.u32 %v236, 7
      %v238 = vsub.s32 0, %v237
      %v239 = vrot.slane %v234, %v238
      %v241 = vadd.f32 %v232, %v239
      %v242 = vadd.f32 %v233, %v239
      %243 = vst.msk [vmem:[#allocation3] sm:$0xff] %vm41, %v241
      %244 = vst.msk [vmem:[#allocation3 + $0x8] sm:$0xff] %vm41, %v242
    $region29: #{tpu_custom_call.1} parent=1 // pred_fallthru
      _
    // Predicated region
    $region30: #{tpu_custom_call.1} parent=1 // pred_check
      _
    $region31: #{tpu_custom_call.1} parent=1 // pred_check_branch
      %246 = sbr.rel (0) target = $region33
    $region32: #{tpu_custom_call.1} parent=1 // pred_region
      %s248 = ssub.s32 256, 256
      %249 = vsyncadd [#allocation4], %s248
      %s250 = sshll.u32 [#allocation3], 4
      %s251 = int_to_ptr.vmem [resolvable:$true] %s250
      %256 = dma.vmem_to_hbm [thread:$0]  %s251, 256, %s5, [#allocation4], 128, 128, 8
    $region33: #{tpu_custom_call.1} parent=1 // pred_fallthru
      _
    // Predicated region
    $region34: #{tpu_custom_call.1} parent=1 // pred_check
      _
    $region35: #{tpu_custom_call.1} parent=1 // pred_check_branch
      %258 = sbr.rel (0) target = $region37
    $region36: #{tpu_custom_call.1} parent=1 // pred_region
      %259 = dma.done [#allocation4], 256
    $region37: #{tpu_custom_call.1} parent=1 // pred_fallthru
      _
    %260 = vsyncpa [#allocation4], 1

</llo_original>
